<compile_context>
chip_gen: v6e
topology: v6e:2x2x1
jax: 0.10.0
libtpu: 0.0.40
codegen_flags: <defaults>
</compile_context>

<pallas_src>
import functools

import jax
import jax.numpy as jnp
from jax.experimental import pallas as pl
from jax.experimental.pallas import tpu as pltpu


def _custom_sigmoid3_kernel(x_ref, y_ref, max_ref, *,
                            slope, bias_pos, bias_neg,
                            rows, tile_rows, ragged):
    x = x_ref[...]
    dt = x.dtype

    # Per-tile max (backs the module's print(torch.max(x))); lane-dense (1,128)
    # row per tile, final reduce in the wrapper.  If the last tile is ragged,
    # mask rows beyond the array with -inf (OOB block reads are unspecified).
    if ragged:
        row0 = pl.program_id(0) * tile_rows
        gids = row0 + jax.lax.broadcasted_iota(jnp.int32, x.shape, 0)
        xm = jnp.where(gids < rows, x, jnp.asarray(-jnp.inf, dt))
    else:
        xm = x
    max_ref[...] = jnp.broadcast_to(jnp.max(xm).astype(jnp.float32), (1, 128))

    # Folded affine + clamp (computed in the input dtype).
    y = x * jnp.asarray(slope, dt)
    if bias_pos == bias_neg:                 # abits=wbits=4 path: pure FMA
        y = y + jnp.asarray(bias_pos, dt)
    else:                                    # general abits/wbits: one select
        y = y + jnp.where(x >= 0, jnp.asarray(bias_pos, dt),
                          jnp.asarray(bias_neg, dt))
    y = jnp.minimum(jnp.maximum(y, jnp.asarray(0.0, dt)), jnp.asarray(1.0, dt))
    y_ref[...] = y.astype(y_ref.dtype)


def custom_sigmoid3(x, abits=4, wbits=4, *, target_block_elems=1024 * 1024):
    """x: any-shape float array. Returns (y with x's shape/dtype, max(x))."""
    orig_shape = x.shape
    total = int(x.size)

    scale = float(2 ** 5 * abits * wbits)            # 512 for 4/4 bits
    bias_pos = (2.0 ** (abits - 1)) * 32.0 / scale   # 0.5 for 4/4 bits
    bias_neg = 1.0 - bias_pos
    slope = 0.03 * 32.0 / scale                      # 0.03/16 for 4/4 bits

    # Pick a lane-dense width (multiple of 128) that divides total so the
    # reshape is free and no pad / slice copy is ever materialized.
    width = None
    for w in (1024, 512, 256, 128):
        if total % w == 0:
            width = w
            break

    flat = x.reshape(-1)
    padded = False
    if width is None:
        # Rare fallback (total not a multiple of 128): one pad pass, -inf is
        # neutral for max and clamps to 0 through the sigmoid.
        width = 128
        rows = pl.cdiv(total, width)
        flat = jnp.pad(flat, (0, rows * width - total),
                       constant_values=-jnp.inf)
        padded = True
    else:
        rows = total // width
    x2d = flat.reshape(rows, width)

    # Block rows: a multiple of 8 (sublane) unless the block covers all rows.
    tile_rows = min(rows, max(8, (target_block_elems // width) // 8 * 8))
    num_tiles = pl.cdiv(rows, tile_rows)

    # v7x megacore: ensure >= 2 grid steps for non-tiny inputs so the
    # "parallel" axis can shard across both TensorCores.
    if num_tiles == 1 and total * x.dtype.itemsize > (2 << 20) and rows >= 16:
        tile_rows = ((pl.cdiv(rows, 2) + 7) // 8) * 8
        num_tiles = pl.cdiv(rows, tile_rows)

    ragged = (rows % tile_rows) != 0

    kernel = functools.partial(
        _custom_sigmoid3_kernel,
        slope=slope, bias_pos=bias_pos, bias_neg=bias_neg,
        rows=rows, tile_rows=tile_rows, ragged=ragged,
    )

    y2d, tile_max = pl.pallas_call(
        kernel,
        out_shape=(
            jax.ShapeDtypeStruct((rows, width), x.dtype),
            jax.ShapeDtypeStruct((num_tiles, 1, 128), jnp.float32),
        ),
        grid=(num_tiles,),
        in_specs=[pl.BlockSpec((tile_rows, width), lambda i: (i, 0))],
        out_specs=(
            pl.BlockSpec((tile_rows, width), lambda i: (i, 0)),
            pl.BlockSpec((None, 1, 128), lambda i: (i, 0, 0)),
        ),
        compiler_params=pltpu.CompilerParams(
            dimension_semantics=("parallel",),
            vmem_limit_bytes=32 * 1024 * 1024),
    )(x2d)

    if padded:
        y = y2d.reshape(-1)[:total].reshape(orig_shape)
    else:
        y = y2d.reshape(orig_shape)
    return y, jnp.max(tile_max)


def _reference(x, abits=4, wbits=4):
    # Literal op chain of the PyTorch module.
    scale = 2 ** 5 * abits * wbits
    y = 2.0 ** (abits - 1) + jnp.abs(x) * 0.03
    y = y * 2.0 ** 5
    y = jnp.where(x >= 0, y, scale - y)
    y = jnp.clip(y, 0.0, float(scale))
    return y / scale


if __name__ == "__main__":
    key = jax.random.PRNGKey(0)

    # Primary shape from the module usage: total divisible by 1024 -> no pad,
    # no slice, single pass through HBM each way.
    x = jax.random.normal(key, (2, 4, 16, 16), dtype=jnp.float32) * 5.0
    y, x_max = custom_sigmoid3(x)
    y = jax.block_until_ready(y)
    x_max = jax.block_until_ready(x_max)
    assert y.shape == x.shape and y.dtype == x.dtype
    assert jnp.allclose(y, _reference(x), atol=1e-6, rtol=1e-6)
    assert jnp.allclose(x_max, jnp.max(x), atol=0.0)

    # Odd total size (not a multiple of 128): exercises the pad fallback path.
    x2 = jax.random.normal(jax.random.PRNGKey(1), (3, 5, 7, 19),
                           dtype=jnp.float32) * 3.0
    y2, m2 = custom_sigmoid3(x2)
    y2 = jax.block_until_ready(y2)
    m2 = jax.block_until_ready(m2)
    assert jnp.allclose(y2, _reference(x2), atol=1e-6, rtol=1e-6)
    assert jnp.allclose(m2, jnp.max(x2), atol=0.0)

    # Multi-tile "parallel" grid with a ragged last tile (small block budget
    # just to exercise the in-kernel masked-max path).
    x3 = jax.random.normal(jax.random.PRNGKey(2), (3, 40, 40, 16),
                           dtype=jnp.float32) * 4.0
    y3, m3 = custom_sigmoid3(x3, target_block_elems=16 * 1024)
    y3 = jax.block_until_ready(y3)
    m3 = jax.block_until_ready(m3)
    assert jnp.allclose(y3, _reference(x3), atol=1e-6, rtol=1e-6)
    assert jnp.allclose(m3, jnp.max(x3), atol=0.0)

    print("KERNEL_OK")
</pallas_src>

<mosaic_0001>
module attributes {stable_mosaic.version = 11 : i64} {
  func.func @_custom_sigmoid3_kernel(%arg0: i32, %arg1: memref<2x1024xf32, #tpu.memory_space<vmem>>, %arg2: memref<2x1024xf32, #tpu.memory_space<vmem>>, %arg3: memref<1x1x128xf32, #tpu.memory_space<vmem>>) attributes {dimension_semantics = [#tpu.dimension_semantics<parallel>], iteration_bounds = array<i64: 1>, scalar_prefetch = 0 : i64, scratch_operands = 0 : i64, tpu.core_type = #tpu.core_type<tc>, window_params = [{transform_indices = @transform_0, window_bounds = array<i64: 2, 1024>}, {transform_indices = @transform_1, window_bounds = array<i64: 2, 1024>}, {transform_indices = @transform_2, window_bounds = array<i64: 1, 1, 128>}]} {
    %c0 = arith.constant 0 : index
    %c0_0 = arith.constant 0 : index
    %0 = vector.load %arg1[%c0, %c0_0] : memref<2x1024xf32, #tpu.memory_space<vmem>>, vector<2x1024xf32>
    %1 = vector.shape_cast %0 : vector<2x1024xf32> to vector<1x2x1024xf32>
    %cst = arith.constant dense<0xFF800000> : vector<1xf32>
    %2 = vector.multi_reduction <maximumf>, %1, %cst [1, 2] : vector<1x2x1024xf32> to vector<1xf32>
    %3 = vector.shape_cast %2 : vector<1xf32> to vector<1x1x1xf32>
    %4 = vector.extract %3[0, 0, 0] : f32 from vector<1x1x1xf32>
    %5 = vector.broadcast %4 : f32 to vector<1x128xf32>
    %c0_1 = arith.constant 0 : index
    %c0_2 = arith.constant 0 : index
    %c0_3 = arith.constant 0 : index
    %6 = vector.load %arg3[%c0_1, %c0_2, %c0_3] : memref<1x1x128xf32, #tpu.memory_space<vmem>>, vector<1x1x128xf32>
    %7 = vector.shape_cast %6 : vector<1x1x128xf32> to vector<1x128xf32>
    %8 = vector.shape_cast %5 : vector<1x128xf32> to vector<1x1x128xf32>
    tpu.vector_store %arg3[%c0_1, %c0_2, %c0_3], %8 {strides = array<i32>} : memref<1x1x128xf32, #tpu.memory_space<vmem>>, vector<1x1x128xf32>,
    %cst_4 = arith.constant 1.875000e-03 : f32
    %9 = vector.broadcast %cst_4 : f32 to vector<2x1024xf32>
    %10 = arith.mulf %0, %9 : vector<2x1024xf32>
    %cst_5 = arith.constant 5.000000e-01 : f32
    %11 = vector.broadcast %cst_5 : f32 to vector<2x1024xf32>
    %12 = arith.addf %10, %11 : vector<2x1024xf32>
    %cst_6 = arith.constant 0.000000e+00 : f32
    %13 = vector.broadcast %cst_6 : f32 to vector<2x1024xf32>
    %14 = arith.maximumf %12, %13 : vector<2x1024xf32>
    %cst_7 = arith.constant 1.000000e+00 : f32
    %15 = vector.broadcast %cst_7 : f32 to vector<2x1024xf32>
    %16 = arith.minimumf %14, %15 : vector<2x1024xf32>
    %c0_8 = arith.constant 0 : index
    %c0_9 = arith.constant 0 : index
    %17 = vector.load %arg2[%c0_8, %c0_9] : memref<2x1024xf32, #tpu.memory_space<vmem>>, vector<2x1024xf32>
    tpu.vector_store %arg2[%c0_8, %c0_9], %16 {strides = array<i32>} : memref<2x1024xf32, #tpu.memory_space<vmem>>, vector<2x1024xf32>,
    return
  }
  func.func @transform_0(%arg0: i32) -> (i32, i32) {
    %c0_i32 = arith.constant 0 : i32
    %c0_i32_0 = arith.constant 0 : i32
    return %arg0, %c0_i32 : i32, i32
  }
  func.func @transform_1(%arg0: i32) -> (i32, i32) {
    %c0_i32 = arith.constant 0 : i32
    %c0_i32_0 = arith.constant 0 : i32
    return %arg0, %c0_i32 : i32, i32
  }
  func.func @transform_2(%arg0: i32) -> (i32, i32, i32) {
    %c0_i32 = arith.constant 0 : i32
    %c0_i32_0 = arith.constant 0 : i32
    %c0_i32_1 = arith.constant 0 : i32
    return %arg0, %c0_i32, %c0_i32_0 : i32, i32, i32
  }
}

</mosaic_0001>

<llo_original>
// kernel: tpu_custom_call.1
$region0: #{tpu_custom_call.1}
  #allocation0 [shape = 'u32[]', space=smem, size = 0x4, offset = 0x4, fixed_abs, tag = 'smem constant byte address 0x4 - core index']
  #allocation1 [shape = 'u32[144,128]{1,0:T(1,128)}', space=vmem, size = 0x12000, scoped, tag = 'internal scratch']
  %s0 = inlined_call_operand.hbm [shape: f32[2,1024], index: 0, kind: input, shape index: {}]
  %s1 = inlined_call_operand.hbm [shape: f32[2,1024], index: 1, kind: output, shape index: {0}]
  %s2 = inlined_call_operand.hbm [shape: f32[1,1,128], index: 2, kind: output, shape index: {1}]
  %3 = xla_tuple %s1, %s2
  %s4 = sld [smem:[#allocation0]]
  $region26: #{tpu_custom_call.1} parent=0
    _
  %s6 = ssub.s32 1, %s4
  %s7 = scalar_select 0, %s6, %s4
  $region1: #{tpu_custom_call.1} parent=0
    #allocation2 [shape = 'u8[8192]{0}', space=vmem, size = 0x2000, scoped, tag = 'input window, operand 0, single buffered']
    #allocation3 [shape = 's32[1]{0}', space=sflag, size = 0x4, scoped, tag = 'scoped memory for tpu_custom_call.1']
    #allocation4 [shape = 's32[1]{0}', space=sflag, size = 0x4, scoped, tag = 'scoped memory for tpu_custom_call.1']
    #allocation5 [shape = 'u8[8192]{0}', space=vmem, size = 0x2000, scoped, tag = 'output window, operand 0, single buffered']
    #allocation6 [shape = 'u8[512]{0}', space=vmem, size = 0x400, scoped, tag = 'output window, operand 1, single buffered']
    #allocation7 [shape = 's32[1]{0}', space=sflag, size = 0x4, scoped, tag = 'scoped memory for tpu_custom_call.1']
    %8 = vsyncpa [#allocation3], 0
    %9 = vsyncpa [#allocation4], 0
    %10 = vsyncpa [#allocation7], 0
    // Predicated region
    $region2: #{tpu_custom_call.1} parent=1 // pred_check
      _
    $region3: #{tpu_custom_call.1} parent=1 // pred_check_branch
      %12 = sbr.rel (0) target = $region5
    $region4: #{tpu_custom_call.1} parent=1 // pred_region
      %s14 = ssub.s32 256, 256
      %15 = vsyncadd [#allocation3], %s14
      %s17 = sshll.u32 [#allocation2], 4
      %s18 = int_to_ptr.vmem [resolvable:$true] %s17
      %20 = dma.hbm_to_vmem [thread:$0]  %s0, 256, %s18, [#allocation3]
    $region5: #{tpu_custom_call.1} parent=1 // pred_fallthru
      _
    // Predicated region
    $region6: #{tpu_custom_call.1} parent=1 // pred_check
      _
    $region7: #{tpu_custom_call.1} parent=1 // pred_check_branch
      %22 = sbr.rel (0) target = $region9
    $region8: #{tpu_custom_call.1} parent=1 // pred_region
      %23 = dma.done [#allocation3], 256
    $region9: #{tpu_custom_call.1} parent=1 // pred_fallthru
      _
    %v24 = vld [vmem:[#allocation2] sm:$0xff]
    %v25 = vld [vmem:[#allocation2 + $0x8] sm:$0xff]
    %v28 = vcombine.high %v24, %v24
    %v30 = vunpack.c.l.s4 1983009808
    %v31 = vunpack.c.0.s8 %v30
    %v32 = vlaneseq
    %v33 = vshrl.u32 %v32, 7
    %v34 = vsub.s32 %v31, %v33
    %v35 = vrot.slane %v24, %v34
    %v37 = vunpack.c.l.s4 1983009808
    %v38 = vunpack.c.0.s8 %v37
    %v39 = vlaneseq
    %v40 = vshrl.u32 %v39, 7
    %v41 = vsub.s32 %v38, %v40
    %v42 = vrot.slane %v28, %v41
    %v43 = vcombine.high %v35, %v35
    %v44 = vcombine.high %v42, %v42
    %v45 = vcombine.high %v25, %v25
    %v47 = vunpack.c.l.s4 1983009808
    %v48 = vunpack.c.0.s8 %v47
    %v49 = vlaneseq
    %v50 = vshrl.u32 %v49, 7
    %v51 = vsub.s32 %v48, %v50
    %v52 = vrot.slane %v25, %v51
    %v54 = vunpack.c.l.s4 1983009808
    %v55 = vunpack.c.0.s8 %v54
    %v56 = vlaneseq
    %v57 = vshrl.u32 %v56, 7
    %v58 = vsub.s32 %v55, %v57
    %v59 = vrot.slane %v45, %v58
    %v60 = vcombine.high %v52, %v52
    %v61 = vcombine.high %v59, %v59
    %vm70 = vcmask 1041408
    %v71 = vsel %vm70, %v35, -inf
    %v72 = vsel %vm70, %v43, -inf
    %v73 = vsel %vm70, %v42, -inf
    %v74 = vsel %vm70, %v44, -inf
    %v75 = vsel %vm70, %v52, -inf
    %v76 = vmax.f32 %v71, %v75
    %v77 = vsel %vm70, %v60, -inf
    %v78 = vmax.f32 %v72, %v77
    %v79 = vsel %vm70, %v59, -inf
    %v80 = vmax.f32 %v73, %v79
    %v81 = vsel %vm70, %v61, -inf
    %v82 = vmax.f32 %v74, %v81
    %v83 = vmax.f32 %v76, %v78
    %v84 = vmax.f32 %v80, %v82
    %v85 = vmax.f32 %v83, %v84
    %86 = vmax.xlane.f32.xlu0 %v85
    %v87 = vpop.xlane.xlu0 %86
    %v88 = vrot.slane %v87, 4
    %v89 = vmax.f32 %v87, %v88
    %v90 = vrot.slane %v89, 2
    %v91 = vmax.f32 %v89, %v90
    %v92 = vrot.slane %v91, 1
    %v93 = vmax.f32 %v91, %v92
    %s94 = vtos %v93
    %v95 = vstv %s94
    %96 = vst [vmem:[#allocation6] sm:$0x1] %v95
    %v97 = vmul.f32 %v24, 0.001875
    %v98 = vmul.f32 %v25, 0.001875
    %v99 = vadd.f32 %v97, 0.5
    %v100 = vadd.f32 %v98, 0.5
    %v101 = vmax.f32 %v99, 0.0
    %v102 = vmax.f32 %v100, 0.0
    %v103 = vmin.f32 %v101, 1.0
    %v104 = vmin.f32 %v102, 1.0
    %105 = vst [vmem:[#allocation5] sm:$0xff] %v103
    %106 = vst [vmem:[#allocation5 + $0x8] sm:$0xff] %v104
    // Predicated region
    $region10: #{tpu_custom_call.1} parent=1 // pred_check
      _
    $region11: #{tpu_custom_call.1} parent=1 // pred_check_branch
      %108 = sbr.rel (0) target = $region13
    $region12: #{tpu_custom_call.1} parent=1 // pred_region
      %s110 = ssub.s32 256, 256
      %111 = vsyncadd [#allocation4], %s110
      %s113 = sshll.u32 [#allocation5], 4
      %s114 = int_to_ptr.vmem [resolvable:$true] %s113
      %116 = dma.vmem_to_hbm [thread:$0]  %s114, 256, %s1, [#allocation4]
    $region13: #{tpu_custom_call.1} parent=1 // pred_fallthru
      _
    // Predicated region
    $region14: #{tpu_custom_call.1} parent=1 // pred_check
      _
    $region15: #{tpu_custom_call.1} parent=1 // pred_check_branch
      %118 = sbr.rel (0) target = $region17
    $region16: #{tpu_custom_call.1} parent=1 // pred_region
      %s120 = ssub.s32 16, 16
      %121 = vsyncadd [#allocation7], %s120
      %s123 = sshll.u32 [#allocation6], 4
      %s124 = int_to_ptr.vmem [resolvable:$true] %s123
      %126 = dma.vmem_to_hbm [thread:$0]  %s124, 16, %s2, [#allocation7]
    $region17: #{tpu_custom_call.1} parent=1 // pred_fallthru
      _
    // Predicated region
    $region18: #{tpu_custom_call.1} parent=1 // pred_check
      _
    $region19: #{tpu_custom_call.1} parent=1 // pred_check_branch
      %128 = sbr.rel (0) target = $region21
    $region20: #{tpu_custom_call.1} parent=1 // pred_region
      %129 = dma.done [#allocation4], 256
    $region21: #{tpu_custom_call.1} parent=1 // pred_fallthru
      _
    // Predicated region
    $region22: #{tpu_custom_call.1} parent=1 // pred_check
      _
    $region23: #{tpu_custom_call.1} parent=1 // pred_check_branch
      %131 = sbr.rel (0) target = $region25
    $region24: #{tpu_custom_call.1} parent=1 // pred_region
      %132 = dma.done [#allocation7], 16
    $region25: #{tpu_custom_call.1} parent=1 // pred_fallthru
      _
    %133 = vsyncpa [#allocation3], 1
    %134 = vsyncpa [#allocation4], 1
    %135 = vsyncpa [#allocation7], 1

</llo_original>
